<compile_context>
chip_gen: v7x
topology: tpu7x:2x2x1
jax: 0.10.0
libtpu: 0.0.40
codegen_flags: <defaults>
</compile_context>

<pallas_src>
import functools

import jax
import jax.numpy as jnp
from jax.experimental import pallas as pl
from jax.experimental.pallas import tpu as pltpu

D_IN = 768     # nn.Linear(768, 128)
D_HID = 128

# Explicit scoped-VMEM budget: ample for the tiles below and safely under the
# physical ceiling on every generation (64 MiB on v7x).
_VMEM_LIMIT = 32 * 1024 * 1024

_LT_MAX = 1024                       # stage-1 row tile over the flattened (B*L, 768) view
_TI_MAX = 1024                       # stage-2 row (sublane) tile cap
_BLOCK_BYTES_MAX = 8 * 1024 * 1024   # stage-2 output block ceiling (double-buffered -> 16 MiB)


def _score_kernel(x_ref, w0_ref, b0_ref, wab_ref, bab_ref, sa_ref, sb_ref):
    # x block: (lt, 768) rows of the flattened (B*L, 768) activations.
    # Cast to the weight dtype (bf16 fast path) so the big matmul runs natively
    # on the MXU; accumulate in f32.  (No-op cast on the exact f32 path.)
    x = x_ref[...].astype(w0_ref.dtype)                                  # (lt, 768)
    h = jnp.dot(x, w0_ref[...], preferred_element_type=jnp.float32)      # (lt, 128)
    h = jnp.maximum(h + b0_ref[...], 0.0)

    # Fused second linear: one (lt,128)@(128,2) matmul gives [sa | sb];
    # the final-layer bias b1 is pre-folded into the sa column (bab = [[b1, 0]]).
    s = jnp.dot(h, wab_ref[...], preferred_element_type=jnp.float32) + bab_ref[...]  # (lt, 2)

    # Lane-dense stores: put the per-row scores on the 128-lane axis so the
    # output writes are unmasked vst, not 1-valid-lane vst.msk.
    sa_ref[...] = jnp.transpose(s[:, 0:1])   # (1, lt)  row scores (+ b1)
    sb_ref[...] = jnp.transpose(s[:, 1:2])   # (1, lt)  col scores


def _make_pair_kernel(compute_dtype):
    def _pair_kernel(sa_ref, sb_ref, out_ref):
        # sa block: (1, ti, 1) column scores; sb block: (1, 1, tj) row scores.
        logits = sa_ref[0] + sb_ref[0]                                   # (ti, tj) f32 outer sum
        x = logits.astype(compute_dtype)
        # sigmoid(x) == 0.5 * (tanh(0.5 * x) + 1): ONE EUP transcendental
        # (vs exp + reciprocal); the extra mul/add ride the idle VALU slots.
        sig = 0.5 * (jnp.tanh(0.5 * x) + 1.0)
        out_ref[0] = sig.astype(out_ref.dtype)
    return _pair_kernel


def hotpoint_forward(text, mask, w0, b0, w1, b1, *,
                     use_bf16=True, out_dtype=jnp.bfloat16):
    """text: (B, L, 768); mask is unused (matches the PyTorch forward)."""
    del mask  # unused in the reference forward pass

    # Keep the caller's dtype: bf16 activations stream at half the HBM traffic
    # and feed the MXU natively.  (Casting here would just relocate traffic.)
    text = jnp.asarray(text)
    B, L, D = text.shape
    assert D == D_IN
    N = B * L
    x2d = text.reshape(N, D_IN)   # flattened row view -> uniform 1-D stage-1 grid

    # --- parameter prep (PyTorch Linear stores weight as (out, in)) ---------
    w0_t = jnp.asarray(w0, jnp.float32).T                     # (768, 128)
    if use_bf16:
        w0_t = w0_t.astype(jnp.bfloat16)                      # MXU-native operands
    b0_r = jnp.asarray(b0, jnp.float32).reshape(1, D_HID)     # (1, 128)

    w1 = jnp.asarray(w1, jnp.float32)                         # (1, 256)
    w_ab = jnp.concatenate([w1[:, :D_HID].T, w1[:, D_HID:].T], axis=1)       # (128, 2)
    b1_r = jnp.asarray(b1, jnp.float32).reshape(1, 1)
    b_ab = jnp.concatenate([b1_r, jnp.zeros((1, 1), jnp.float32)], axis=1)   # [[b1, 0]]

    # --- stage 1: per-row scores, lane-dense (1, N) outputs -----------------
    lt = N if N <= _LT_MAX else _LT_MAX    # multiple of 128 (=> also of 8) or == N
    grid1 = (pl.cdiv(N, lt),)

    sa_flat, sb_flat = pl.pallas_call(
        _score_kernel,
        out_shape=(jax.ShapeDtypeStruct((1, N), jnp.float32),
                   jax.ShapeDtypeStruct((1, N), jnp.float32)),
        grid_spec=pltpu.PrefetchScalarGridSpec(
            num_scalar_prefetch=0,
            grid=grid1,
            in_specs=[
                pl.BlockSpec((lt, D_IN), lambda i: (i, 0)),
                pl.BlockSpec((D_IN, D_HID), lambda i: (0, 0)),
                pl.BlockSpec((1, D_HID), lambda i: (0, 0)),
                pl.BlockSpec((D_HID, 2), lambda i: (0, 0)),
                pl.BlockSpec((1, 2), lambda i: (0, 0)),
            ],
            out_specs=[
                pl.BlockSpec((1, lt), lambda i: (0, i)),
                pl.BlockSpec((1, lt), lambda i: (0, i)),
            ],
        ),
        compiler_params=pltpu.CompilerParams(
            dimension_semantics=("parallel",),
            vmem_limit_bytes=_VMEM_LIMIT),
        cost_estimate=pl.CostEstimate(
            flops=2 * N * D_IN * D_HID + 2 * N * D_HID * 2,
            transcendentals=0,
            bytes_accessed=int(N * D_IN * x2d.dtype.itemsize
                               + D_IN * D_HID * w0_t.dtype.itemsize
                               + 8 * N)),
    )(x2d, w0_t, b0_r, w_ab, b_ab)

    # Tiny (B*L)-element relayouts in the wrapper (negligible vs. B*L*L output).
    sa = sa_flat.reshape(B, L, 1)    # broadcasts along lanes in stage 2
    sb = sb_flat.reshape(B, 1, L)    # lane-axis operand in stage 2

    # --- stage 2: tiled, lane-dense outer sum + sigmoid ---------------------
    out_itemsize = jnp.dtype(out_dtype).itemsize
    ti = L if L <= _TI_MAX else _TI_MAX                 # multiple of 8 or == L
    if ti * L * out_itemsize <= _BLOCK_BYTES_MAX:
        tj = L          # whole row per block: constant sb block per (b,i), widest stores
    else:
        tj = max(128, ((_BLOCK_BYTES_MAX // 2) // (ti * out_itemsize)) // 128 * 128)

    # v7x has 2 TensorCores sharded over the parallel grid dims: don't let a
    # B == 1 case collapse the grid to a single block.
    if B == 1 and ti == L and tj == L and L > 8:
        ti = max(8, (((L + 1) // 2 + 7) // 8) * 8)      # ~L/2, multiple of 8

    grid2 = (B, pl.cdiv(L, ti), pl.cdiv(L, tj))

    # bf16 tanh on v6e/v7x halves EUP traffic once the output is bf16; on v5e
    # the compiler extends it to f32 and it stays hidden under the HBM write.
    compute_dtype = jnp.bfloat16 if jnp.dtype(out_dtype) == jnp.bfloat16 else jnp.float32

    logits = pl.pallas_call(
        _make_pair_kernel(compute_dtype),
        out_shape=jax.ShapeDtypeStruct((B, L, L), out_dtype),
        grid_spec=pltpu.PrefetchScalarGridSpec(
            num_scalar_prefetch=0,
            grid=grid2,
            in_specs=[
                pl.BlockSpec((1, ti, 1), lambda b, i, j: (b, i, 0)),
                pl.BlockSpec((1, 1, tj), lambda b, i, j: (b, 0, j)),
            ],
            out_specs=pl.BlockSpec((1, ti, tj), lambda b, i, j: (b, i, j)),
        ),
        compiler_params=pltpu.CompilerParams(
            dimension_semantics=("parallel", "parallel", "parallel"),
            vmem_limit_bytes=_VMEM_LIMIT),
        cost_estimate=pl.CostEstimate(
            flops=3 * B * L * L,
            transcendentals=B * L * L,
            bytes_accessed=int(B * L * L * out_itemsize + 8 * B * L)),
    )(sa, sb)

    return logits


def hotpoint_reference(text, w0, b0, w1, b1):
    # Literal translation of the PyTorch forward (for the correctness check).
    h = jax.nn.relu(jnp.einsum("bld,hd->blh", text, w0) + b0)            # (B,L,128)
    L = h.shape[1]
    r1 = jnp.repeat(h[:, :, None, :], L, axis=2)                         # (B,L,L,128)
    r2 = jnp.repeat(h[:, None, :, :], L, axis=1)                         # (B,L,L,128)
    cat = jnp.concatenate([r1, r2], axis=-1)                             # (B,L,L,256)
    logits = jnp.einsum("bijc,oc->bijo", cat, w1)[..., 0] + b1[0]
    return jax.nn.sigmoid(logits)


if __name__ == "__main__":
    key = jax.random.PRNGKey(0)
    k_text, k_w0, k_b0, k_w1, k_b1 = jax.random.split(key, 5)

    B, L = 2, 8
    text = jax.random.normal(k_text, (B, L, D_IN), dtype=jnp.float32)
    mask = jnp.ones((B, L), dtype=jnp.float32)  # unused, mirrors the PyTorch signature

    # Deterministic synthetic parameters (PyTorch Linear weight shapes).
    w0 = 0.02 * jax.random.normal(k_w0, (D_HID, D_IN), dtype=jnp.float32)    # linear0.weight
    b0 = 0.02 * jax.random.normal(k_b0, (D_HID,), dtype=jnp.float32)         # linear0.bias
    w1 = 0.02 * jax.random.normal(k_w1, (1, 2 * D_HID), dtype=jnp.float32)   # linear.weight
    b1 = 0.02 * jax.random.normal(k_b1, (1,), dtype=jnp.float32)             # linear.bias

    ref = hotpoint_reference(text, w0, b0, w1, b1)

    # Exact path (f32 operands, f32 output) — must match the reference tightly.
    out_f32 = jax.block_until_ready(
        hotpoint_forward(text, mask, w0, b0, w1, b1,
                         use_bf16=False, out_dtype=jnp.float32))
    assert out_f32.shape == (B, L, L)
    assert jnp.allclose(out_f32, ref, atol=1e-5, rtol=1e-5), "f32 path mismatch"

    # Fast path (defaults: bf16 MXU operands, f32 accumulation, bf16 output).
    out_fast = jax.block_until_ready(
        hotpoint_forward(text, mask, w0, b0, w1, b1))
    assert out_fast.shape == (B, L, L)
    assert out_fast.dtype == jnp.bfloat16
    assert jnp.allclose(out_fast.astype(jnp.float32), ref,
                        atol=2e-2, rtol=2e-2), "bf16 path mismatch"

    print("KERNEL_OK")
</pallas_src>

<mosaic_0001>
module attributes {stable_mosaic.version = 11 : i64} {
  func.func @_score_kernel(%arg0: i32, %arg1: memref<16x768xf32, #tpu.memory_space<vmem>>, %arg2: memref<768x128xf32, #tpu.memory_space<vmem>>, %arg3: memref<1x128xf32, #tpu.memory_space<vmem>>, %arg4: memref<128x2xf32, #tpu.memory_space<vmem>>, %arg5: memref<1x2xf32, #tpu.memory_space<vmem>>, %arg6: memref<1x16xf32, #tpu.memory_space<vmem>>, %arg7: memref<1x16xf32, #tpu.memory_space<vmem>>) attributes {dimension_semantics = [#tpu.dimension_semantics<parallel>], iteration_bounds = array<i64: 1>, scalar_prefetch = 0 : i64, scratch_operands = 0 : i64, tpu.core_type = #tpu.core_type<tc>, window_params = [{transform_indices = @transform_0, window_bounds = array<i64: 16, 768>}, {pipeline_mode = #tpu.pipeline_mode<synchronous>, transform_indices = @transform_1, window_bounds = array<i64: 768, 128>}, {pipeline_mode = #tpu.pipeline_mode<synchronous>, transform_indices = @transform_2, window_bounds = array<i64: 1, 128>}, {pipeline_mode = #tpu.pipeline_mode<synchronous>, transform_indices = @transform_3, window_bounds = array<i64: 128, 2>}, {pipeline_mode = #tpu.pipeline_mode<synchronous>, transform_indices = @transform_4, window_bounds = array<i64: 1, 2>}, {transform_indices = @transform_5, window_bounds = array<i64: 1, 16>}, {transform_indices = @transform_6, window_bounds = array<i64: 1, 16>}]} {
    %c0 = arith.constant 0 : index
    %c0_0 = arith.constant 0 : index
    %0 = vector.load %arg1[%c0, %c0_0] : memref<16x768xf32, #tpu.memory_space<vmem>>, vector<16x768xf32>
    %c0_1 = arith.constant 0 : index
    %c0_2 = arith.constant 0 : index
    %1 = vector.load %arg2[%c0_1, %c0_2] : memref<768x128xf32, #tpu.memory_space<vmem>>, vector<768x128xf32>
    %cst = arith.constant dense<0.000000e+00> : vector<16x128xf32>
    %2 = tpu.matmul %0, %1, %cst {dimension_numbers = #tpu.dot_dimension_numbers<[1], [0], [0], [1], [0, 0, 1, 1], [], []>} : vector<16x768xf32>, vector<768x128xf32>, vector<16x128xf32> -> vector<16x128xf32>
    %c0_3 = arith.constant 0 : index
    %c0_4 = arith.constant 0 : index
    %3 = vector.load %arg3[%c0_3, %c0_4] : memref<1x128xf32, #tpu.memory_space<vmem>>, vector<1x128xf32>
    %4 = vector.broadcast %3 : vector<1x128xf32> to vector<16x128xf32>
    %5 = arith.addf %2, %4 : vector<16x128xf32>
    %cst_5 = arith.constant 0.000000e+00 : f32
    %6 = vector.broadcast %cst_5 : f32 to vector<16x128xf32>
    %7 = arith.maximumf %5, %6 : vector<16x128xf32>
    %c0_6 = arith.constant 0 : index
    %c0_7 = arith.constant 0 : index
    %8 = vector.load %arg4[%c0_6, %c0_7] : memref<128x2xf32, #tpu.memory_space<vmem>>, vector<128x2xf32>
    %cst_8 = arith.constant dense<0.000000e+00> : vector<16x2xf32>
    %9 = tpu.matmul %7, %8, %cst_8 {dimension_numbers = #tpu.dot_dimension_numbers<[1], [0], [0], [1], [0, 0, 1, 1], [], []>} : vector<16x128xf32>, vector<128x2xf32>, vector<16x2xf32> -> vector<16x2xf32>
    %c0_9 = arith.constant 0 : index
    %c0_10 = arith.constant 0 : index
    %10 = vector.load %arg5[%c0_9, %c0_10] : memref<1x2xf32, #tpu.memory_space<vmem>>, vector<1x2xf32>
    %11 = vector.broadcast %10 : vector<1x2xf32> to vector<16x2xf32>
    %12 = arith.addf %9, %11 : vector<16x2xf32>
    %13 = vector.extract_strided_slice %12 {offsets = [0, 0], sizes = [16, 1], strides = [1, 1]} : vector<16x2xf32> to vector<16x1xf32>
    %14 = tpu.transpose %13, [1, 0] : vector<16x1xf32> -> vector<1x16xf32>
    %c0_11 = arith.constant 0 : index
    %c0_12 = arith.constant 0 : index
    %15 = vector.load %arg6[%c0_11, %c0_12] : memref<1x16xf32, #tpu.memory_space<vmem>>, vector<1x16xf32>
    tpu.vector_store %arg6[%c0_11, %c0_12], %14 {strides = array<i32>} : memref<1x16xf32, #tpu.memory_space<vmem>>, vector<1x16xf32>,
    %16 = vector.extract_strided_slice %12 {offsets = [0, 1], sizes = [16, 1], strides = [1, 1]} : vector<16x2xf32> to vector<16x1xf32>
    %17 = tpu.transpose %16, [1, 0] : vector<16x1xf32> -> vector<1x16xf32>
    %c0_13 = arith.constant 0 : index
    %c0_14 = arith.constant 0 : index
    %18 = vector.load %arg7[%c0_13, %c0_14] : memref<1x16xf32, #tpu.memory_space<vmem>>, vector<1x16xf32>
    tpu.vector_store %arg7[%c0_13, %c0_14], %17 {strides = array<i32>} : memref<1x16xf32, #tpu.memory_space<vmem>>, vector<1x16xf32>,
    return
  }
  func.func @transform_0(%arg0: i32) -> (i32, i32) {
    %c0_i32 = arith.constant 0 : i32
    %c0_i32_0 = arith.constant 0 : i32
    return %arg0, %c0_i32 : i32, i32
  }
  func.func @transform_1(%arg0: i32) -> (i32, i32) {
    %c0_i32 = arith.constant 0 : i32
    %c0_i32_0 = arith.constant 0 : i32
    %c0_i32_1 = arith.constant 0 : i32
    return %c0_i32, %c0_i32_0 : i32, i32
  }
  func.func @transform_2(%arg0: i32) -> (i32, i32) {
    %c0_i32 = arith.constant 0 : i32
    %c0_i32_0 = arith.constant 0 : i32
    %c0_i32_1 = arith.constant 0 : i32
    return %c0_i32, %c0_i32_0 : i32, i32
  }
  func.func @transform_3(%arg0: i32) -> (i32, i32) {
    %c0_i32 = arith.constant 0 : i32
    %c0_i32_0 = arith.constant 0 : i32
    %c0_i32_1 = arith.constant 0 : i32
    return %c0_i32, %c0_i32_0 : i32, i32
  }
  func.func @transform_4(%arg0: i32) -> (i32, i32) {
    %c0_i32 = arith.constant 0 : i32
    %c0_i32_0 = arith.constant 0 : i32
    %c0_i32_1 = arith.constant 0 : i32
    return %c0_i32, %c0_i32_0 : i32, i32
  }
  func.func @transform_5(%arg0: i32) -> (i32, i32) {
    %c0_i32 = arith.constant 0 : i32
    %c0_i32_0 = arith.constant 0 : i32
    return %c0_i32, %arg0 : i32, i32
  }
  func.func @transform_6(%arg0: i32) -> (i32, i32) {
    %c0_i32 = arith.constant 0 : i32
    %c0_i32_0 = arith.constant 0 : i32
    return %c0_i32, %arg0 : i32, i32
  }
}

</mosaic_0001>

<llo_original>
// kernel: tpu_custom_call.1
$region0: #{tpu_custom_call.1}
  #allocation0 [shape = 'u32[]', space=smem, size = 0x4, offset = 0x4, fixed_abs, tag = 'smem constant byte address 0x4 - core index']
  #allocation1 [shape = 'u32[144,128]{1,0:T(1,128)}', space=vmem, size = 0x12000, scoped, tag = 'internal scratch']
  %s0 = inlined_call_operand.vmem [shape: f32[16,768], index: 0, kind: input, shape index: {}]
  %s1 = inlined_call_operand.hbm [shape: f32[768,128], index: 1, kind: input, shape index: {}]
  %s2 = inlined_call_operand.vmem [shape: f32[1,128], index: 2, kind: input, shape index: {}]
  %s3 = inlined_call_operand.vmem [shape: f32[128,2], index: 3, kind: input, shape index: {}]
  %s4 = inlined_call_operand.vmem [shape: f32[1,2], index: 4, kind: input, shape index: {}]
  %s5 = inlined_call_operand.hbm [shape: f32[1,16], index: 5, kind: output, shape index: {0}]
  %s6 = inlined_call_operand.hbm [shape: f32[1,16], index: 6, kind: output, shape index: {1}]
  %7 = xla_tuple %s5, %s6
  %s8 = sld [smem:[#allocation0]]
  $region42: #{tpu_custom_call.1} parent=0
    _
  %s10 = ssub.s32 1, %s8
  %s11 = scalar_select 0, %s10, %s8
  $region1: #{tpu_custom_call.1} parent=0
    #allocation2 [shape = 'u8[393216]{0}', space=vmem, size = 0x60000, scoped, tag = 'input window, operand 1, single buffered']
    #allocation3 [shape = 's32[1]{0}', space=sflag, size = 0x4, scoped, tag = 'scoped memory for tpu_custom_call.1']
    #allocation4 [shape = 's32[1]{0}', space=sflag, size = 0x4, scoped, tag = 'scoped memory for tpu_custom_call.1']
    #allocation5 [shape = 'u8[512]{0}', space=vmem, size = 0x400, scoped, tag = 'output window, operand 0, single buffered']
    #allocation6 [shape = 'u8[512]{0}', space=vmem, size = 0x400, scoped, tag = 'output window, operand 1, single buffered']
    #allocation7 [shape = 's32[1]{0}', space=sflag, size = 0x4, scoped, tag = 'scoped memory for tpu_custom_call.1']
    %12 = vsyncpa [#allocation3], 0
    %13 = vsyncpa [#allocation4], 0
    %14 = vsyncpa [#allocation7], 0
    // Predicated region
    $region2: #{tpu_custom_call.1} parent=1 // pred_check
      _
    $region3: #{tpu_custom_call.1} parent=1 // pred_check_branch
      %16 = sbr.rel (0) target = $region5
    $region4: #{tpu_custom_call.1} parent=1 // pred_region
      _
    $region5: #{tpu_custom_call.1} parent=1 // pred_fallthru
      _
    // Predicated region
    $region6: #{tpu_custom_call.1} parent=1 // pred_check
      _
    $region7: #{tpu_custom_call.1} parent=1 // pred_check_branch
      %18 = sbr.rel (0) target = $region9
    $region8: #{tpu_custom_call.1} parent=1 // pred_region
      %s20 = ssub.s32 12288, 12288
      %21 = vsyncadd [#allocation3], %s20
      %s22 = sshll.u32 [#allocation2], 4
      %s23 = int_to_ptr.vmem [resolvable:$true] %s22
      %28 = dma.hbm_to_vmem [thread:$0]  %s1, 12288, %s23, [#allocation3], 128, 128, 8
    $region9: #{tpu_custom_call.1} parent=1 // pred_fallthru
      _
    // Predicated region
    $region10: #{tpu_custom_call.1} parent=1 // pred_check
      _
    $region11: #{tpu_custom_call.1} parent=1 // pred_check_branch
      %30 = sbr.rel (0) target = $region13
    $region12: #{tpu_custom_call.1} parent=1 // pred_region
      _
    $region13: #{tpu_custom_call.1} parent=1 // pred_fallthru
      _
    // Predicated region
    $region14: #{tpu_custom_call.1} parent=1 // pred_check
      _
    $region15: #{tpu_custom_call.1} parent=1 // pred_check_branch
      %32 = sbr.rel (0) target = $region17
    $region16: #{tpu_custom_call.1} parent=1 // pred_region
      _
    $region17: #{tpu_custom_call.1} parent=1 // pred_fallthru
      _
    // Predicated region
    $region18: #{tpu_custom_call.1} parent=1 // pred_check
      _
    $region19: #{tpu_custom_call.1} parent=1 // pred_check_branch
      %34 = sbr.rel (0) target = $region21
    $region20: #{tpu_custom_call.1} parent=1 // pred_region
      _
    $region21: #{tpu_custom_call.1} parent=1 // pred_fallthru
      _
    // Predicated region
    $region22: #{tpu_custom_call.1} parent=1 // pred_check
      _
    $region23: #{tpu_custom_call.1} parent=1 // pred_check_branch
      %36 = sbr.rel (0) target = $region25
    $region24: #{tpu_custom_call.1} parent=1 // pred_region
      %37 = dma.done [#allocation3], 12288
    $region25: #{tpu_custom_call.1} parent=1 // pred_fallthru
      _
    %v38 = vld [vmem:[%s0] sm:$0xff]
    %v39 = vld [vmem:[%s0 + $0x8] sm:$0xff]
    %v40 = vld [vmem:[%s0 + $0x10] sm:$0xff]
    %v41 = vld [vmem:[%s0 + $0x18] sm:$0xff]
    %v42 = vld [vmem:[%s0 + $0x20] sm:$0xff]
    %v43 = vld [vmem:[%s0 + $0x28] sm:$0xff]
    %v44 = vld [vmem:[%s0 + $0x30] sm:$0xff]
    %v45 = vld [vmem:[%s0 + $0x38] sm:$0xff]
    %v46 = vld [vmem:[%s0 + $0x40] sm:$0xff]
    %v47 = vld [vmem:[%s0 + $0x48] sm:$0xff]
    %v48 = vld [vmem:[%s0 + $0x50] sm:$0xff]
    %v49 = vld [vmem:[%s0 + $0x58] sm:$0xff]
    %v50 = vld [vmem:[#allocation2] sm:$0xff]
    %v51 = vld [vmem:[#allocation2 + $0x8] sm:$0xff]
    %v52 = vld [vmem:[#allocation2 + $0x10] sm:$0xff]
    %v53 = vld [vmem:[#allocation2 + $0x18] sm:$0xff]
    %v54 = vld [vmem:[#allocation2 + $0x20] sm:$0xff]
    %v55 = vld [vmem:[#allocation2 + $0x28] sm:$0xff]
    %v56 = vld [vmem:[#allocation2 + $0x30] sm:$0xff]
    %v57 = vld [vmem:[#allocation2 + $0x38] sm:$0xff]
    %v58 = vld [vmem:[#allocation2 + $0x40] sm:$0xff]
    %v59 = vld [vmem:[#allocation2 + $0x48] sm:$0xff]
    %v60 = vld [vmem:[#allocation2 + $0x50] sm:$0xff]
    %v61 = vld [vmem:[#allocation2 + $0x58] sm:$0xff]
    %v62 = vld [vmem:[#allocation2 + $0x60] sm:$0xff]
    %v63 = vld [vmem:[#allocation2 + $0x68] sm:$0xff]
    %v64 = vld [vmem:[#allocation2 + $0x70] sm:$0xff]
    %v65 = vld [vmem:[#allocation2 + $0x78] sm:$0xff]
    %v66 = vld [vmem:[#allocation2 + $0x80] sm:$0xff]
    %v67 = vld [vmem:[#allocation2 + $0x88] sm:$0xff]
    %v68 = vld [vmem:[#allocation2 + $0x90] sm:$0xff]
    %v69 = vld [vmem:[#allocation2 + $0x98] sm:$0xff]
    %v70 = vld [vmem:[#allocation2 + $0xa0] sm:$0xff]
    %v71 = vld [vmem:[#allocation2 + $0xa8] sm:$0xff]
    %v72 = vld [vmem:[#allocation2 + $0xb0] sm:$0xff]
    %v73 = vld [vmem:[#allocation2 + $0xb8] sm:$0xff]
    %v74 = vld [vmem:[#allocation2 + $0xc0] sm:$0xff]
    %v75 = vld [vmem:[#allocation2 + $0xc8] sm:$0xff]
    %v76 = vld [vmem:[#allocation2 + $0xd0] sm:$0xff]
    %v77 = vld [vmem:[#allocation2 + $0xd8] sm:$0xff]
    %v78 = vld [vmem:[#allocation2 + $0xe0] sm:$0xff]
    %v79 = vld [vmem:[#allocation2 + $0xe8] sm:$0xff]
    %v80 = vld [vmem:[#allocation2 + $0xf0] sm:$0xff]
    %v81 = vld [vmem:[#allocation2 + $0xf8] sm:$0xff]
    %v82 = vld [vmem:[#allocation2 + $0x100] sm:$0xff]
    %v83 = vld [vmem:[#allocation2 + $0x108] sm:$0xff]
    %v84 = vld [vmem:[#allocation2 + $0x110] sm:$0xff]
    %v85 = vld [vmem:[#allocation2 + $0x118] sm:$0xff]
    %v86 = vld [vmem:[#allocation2 + $0x120] sm:$0xff]
    %v87 = vld [vmem:[#allocation2 + $0x128] sm:$0xff]
    %v88 = vld [vmem:[#allocation2 + $0x130] sm:$0xff]
    %v89 = vld [vmem:[#allocation2 + $0x138] sm:$0xff]
    %v90 = vld [vmem:[#allocation2 + $0x140] sm:$0xff]
    %v91 = vld [vmem:[#allocation2 + $0x148] sm:$0xff]
    %v92 = vld [vmem:[#allocation2 + $0x150] sm:$0xff]
    %v93 = vld [vmem:[#allocation2 + $0x158] sm:$0xff]
    %v94 = vld [vmem:[#allocation2 + $0x160] sm:$0xff]
    %v95 = vld [vmem:[#allocation2 + $0x168] sm:$0xff]
    %v96 = vld [vmem:[#allocation2 + $0x170] sm:$0xff]
    %v97 = vld [vmem:[#allocation2 + $0x178] sm:$0xff]
    %v98 = vld [vmem:[#allocation2 + $0x180] sm:$0xff]
    %v99 = vld [vmem:[#allocation2 + $0x188] sm:$0xff]
    %v100 = vld [vmem:[#allocation2 + $0x190] sm:$0xff]
    %v101 = vld [vmem:[#allocation2 + $0x198] sm:$0xff]
    %v102 = vld [vmem:[#allocation2 + $0x1a0] sm:$0xff]
    %v103 = vld [vmem:[#allocation2 + $0x1a8] sm:$0xff]
    %v104 = vld [vmem:[#allocation2 + $0x1b0] sm:$0xff]
    %v105 = vld [vmem:[#allocation2 + $0x1b8] sm:$0xff]
    %v106 = vld [vmem:[#allocation2 + $0x1c0] sm:$0xff]
    %v107 = vld [vmem:[#allocation2 + $0x1c8] sm:$0xff]
    %v108 = vld [vmem:[#allocation2 + $0x1d0] sm:$0xff]
    %v109 = vld [vmem:[#allocation2 + $0x1d8] sm:$0xff]
    %v110 = vld [vmem:[#allocation2 + $0x1e0] sm:$0xff]
    %v111 = vld [vmem:[#allocation2 + $0x1e8] sm:$0xff]
    %v112 = vld [vmem:[#allocation2 + $0x1f0] sm:$0xff]
    %v113 = vld [vmem:[#allocation2 + $0x1f8] sm:$0xff]
    %v114 = vld [vmem:[#allocation2 + $0x200] sm:$0xff]
    %v115 = vld [vmem:[#allocation2 + $0x208] sm:$0xff]
    %v116 = vld [vmem:[#allocation2 + $0x210] sm:$0xff]
    %v117 = vld [vmem:[#allocation2 + $0x218] sm:$0xff]
    %v118 = vld [vmem:[#allocation2 + $0x220] sm:$0xff]
    %v119 = vld [vmem:[#allocation2 + $0x228] sm:$0xff]
    %v120 = vld [vmem:[#allocation2 + $0x230] sm:$0xff]
    %v121 = vld [vmem:[#allocation2 + $0x238] sm:$0xff]
    %v122 = vld [vmem:[#allocation2 + $0x240] sm:$0xff]
    %v123 = vld [vmem:[#allocation2 + $0x248] sm:$0xff]
    %v124 = vld [vmem:[#allocation2 + $0x250] sm:$0xff]
    %v125 = vld [vmem:[#allocation2 + $0x258] sm:$0xff]
    %v126 = vld [vmem:[#allocation2 + $0x260] sm:$0xff]
    %v127 = vld [vmem:[#allocation2 + $0x268] sm:$0xff]
    %v128 = vld [vmem:[#allocation2 + $0x270] sm:$0xff]
    %v129 = vld [vmem:[#allocation2 + $0x278] sm:$0xff]
    %v130 = vld [vmem:[#allocation2 + $0x280] sm:$0xff]
    %v131 = vld [vmem:[#allocation2 + $0x288] sm:$0xff]
    %v132 = vld [vmem:[#allocation2 + $0x290] sm:$0xff]
    %v133 = vld [vmem:[#allocation2 + $0x298] sm:$0xff]
    %v134 = vld [vmem:[#allocation2 + $0x2a0] sm:$0xff]
    %v135 = vld [vmem:[#allocation2 + $0x2a8] sm:$0xff]
    %v136 = vld [vmem:[#allocation2 + $0x2b0] sm:$0xff]
    %v137 = vld [vmem:[#allocation2 + $0x2b8] sm:$0xff]
    %v138 = vld [vmem:[#allocation2 + $0x2c0] sm:$0xff]
    %v139 = vld [vmem:[#allocation2 + $0x2c8] sm:$0xff]
    %v140 = vld [vmem:[#allocation2 + $0x2d0] sm:$0xff]
    %v141 = vld [vmem:[#allocation2 + $0x2d8] sm:$0xff]
    %v142 = vld [vmem:[#allocation2 + $0x2e0] sm:$0xff]
    %v143 = vld [vmem:[#allocation2 + $0x2e8] sm:$0xff]
    %v144 = vld [vmem:[#allocation2 + $0x2f0] sm:$0xff]
    %v145 = vld [vmem:[#allocation2 + $0x2f8] sm:$0xff]
    %v146 = vld [vmem:[%s2] sm:$0x1]
    %v148 = vlaneseq
    %v149 = vshrl.u32 %v148, 7
    %v150 = vsub.s32 0, %v149
    %v151 = vrot.slane %v146, %v150
    %153 = vmatprep.subr.mxu0 0.0
    %154 = vmatpush1.msra.mxu0 %v50
    %155 = vmatprep.subr.mxu0 0.0
    %156 = vmatpush1.msra.mxu0 %v51
    %157 = vmatprep.subr.mxu0 0.0
    %158 = vmatpush1.msra.mxu0 %v52
    %159 = vmatprep.subr.mxu0 0.0
    %160 = vmatpush1.msra.mxu0 %v53
    %161 = vmatprep.subr.mxu0 0.0
    %162 = vmatpush1.msra.mxu0 %v54
    %163 = vmatprep.subr.mxu0 0.0
    %164 = vmatpush1.msra.mxu0 %v55
    %165 = vmatprep.subr.mxu0 0.0
    %166 = vmatpush1.msra.mxu0 %v56
    %167 = vmatprep.subr.mxu0 0.0
    %168 = vmatpush1.msra.mxu0 %v57
    %169 = vmatprep.subr.mxu0 0.0
    %170 = vmatpush1.msra.mxu0 %v58
    %171 = vmatprep.subr.mxu0 0.0
    %172 = vmatpush1.msra.mxu0 %v59
    %173 = vmatprep.subr.mxu0 0.0
    %174 = vmatpush1.msra.mxu0 %v60
    %175 = vmatprep.subr.mxu0 0.0
    %176 = vmatpush1.msra.mxu0 %v61
    %177 = vmatprep.subr.mxu0 0.0
    %178 = vmatpush1.msra.mxu0 %v62
    %179 = vmatprep.subr.mxu0 0.0
    %180 = vmatpush1.msra.mxu0 %v63
    %181 = vmatprep.subr.mxu0 0.0
    %182 = vmatpush1.msra.mxu0 %v64
    %183 = vmatprep.subr.mxu0 0.0
    %184 = vmatpush1.msra.mxu0 %v65
    %185 = vmatprep.subr.mxu0 0.0
    %186 = vmatpush1.msra.mxu0 %v66
    %187 = vmatprep.subr.mxu0 0.0
    %188 = vmatpush1.msra.mxu0 %v67
    %189 = vmatprep.subr.mxu0 0.0
    %190 = vmatpush1.msra.mxu0 %v68
    %191 = vmatprep.subr.mxu0 0.0
    %192 = vmatpush1.msra.mxu0 %v69
    %193 = vmatprep.subr.mxu0 0.0
    %194 = vmatpush1.msra.mxu0 %v70
    %195 = vmatprep.subr.mxu0 0.0
    %196 = vmatpush1.msra.mxu0 %v71
    %197 = vmatprep.subr.mxu0 0.0
    %198 = vmatpush1.msra.mxu0 %v72
    %199 = vmatprep.subr.mxu0 0.0
    %200 = vmatpush1.msra.mxu0 %v73
    %201 = vmatprep.subr.mxu0 0.0
    %202 = vmatpush1.msra.mxu0 %v74
    %203 = vmatprep.subr.mxu0 0.0
    %204 = vmatpush1.msra.mxu0 %v75
    %205 = vmatprep.subr.mxu0 0.0
    %206 = vmatpush1.msra.mxu0 %v76
    %207 = vmatprep.subr.mxu0 0.0
    %208 = vmatpush1.msra.mxu0 %v77
    %209 = vmatprep.subr.mxu0 0.0
    %210 = vmatpush1.msra.mxu0 %v78
    %211 = vmatprep.subr.mxu0 0.0
    %212 = vmatpush1.msra.mxu0 %v79
    %213 = vmatprep.subr.mxu0 0.0
    %214 = vmatpush1.msra.mxu0 %v80
    %215 = vmatprep.subr.mxu0 0.0
    %216 = vmatpush1.msra.mxu0 %v81
    %217 = vmatprep.mubr.f32.mxu0 %v39
    %218 = vmatmul.mubr.f32.gmra.mrb[0].mxu0 %v38
    %v219 = vpop.f32.mrb[0].mxu0
    %v220 = vadd.f32 %v151, %v219
    %v221 = vpop.f32.mrb[0].mxu0
    %222 = vmatprep.mubr.f32.mxu0 %v45
    %223 = vmatmul.mubr.f32.gmra.mrb[0].mxu0 %v44
    %v224 = vpop.f32.mrb[0].mxu0
    %v225 = vadd.f32 %v151, %v224
    %v226 = vpop.f32.mrb[0].mxu0
    %227 = vdwg.mxu0
    %228 = vmatprep.subr.mxu0 0.0
    %229 = vmatpush1.msra.mxu0 %v82
    %230 = vmatprep.subr.mxu0 0.0
    %231 = vmatpush1.msra.mxu0 %v83
    %232 = vmatprep.subr.mxu0 0.0
    %233 = vmatpush1.msra.mxu0 %v84
    %234 = vmatprep.subr.mxu0 0.0
    %235 = vmatpush1.msra.mxu0 %v85
    %236 = vmatprep.subr.mxu0 0.0
    %237 = vmatpush1.msra.mxu0 %v86
    %238 = vmatprep.subr.mxu0 0.0
    %239 = vmatpush1.msra.mxu0 %v87
    %240 = vmatprep.subr.mxu0 0.0
    %241 = vmatpush1.msra.mxu0 %v88
    %242 = vmatprep.subr.mxu0 0.0
    %243 = vmatpush1.msra.mxu0 %v89
    %244 = vmatprep.subr.mxu0 0.0
    %245 = vmatpush1.msra.mxu0 %v90
    %246 = vmatprep.subr.mxu0 0.0
    %247 = vmatpush1.msra.mxu0 %v91
    %248 = vmatprep.subr.mxu0 0.0
    %249 = vmatpush1.msra.mxu0 %v92
    %250 = vmatprep.subr.mxu0 0.0
    %251 = vmatpush1.msra.mxu0 %v93
    %252 = vmatprep.subr.mxu0 0.0
    %253 = vmatpush1.msra.mxu0 %v94
    %254 = vmatprep.subr.mxu0 0.0
    %255 = vmatpush1.msra.mxu0 %v95
    %256 = vmatprep.subr.mxu0 0.0
    %257 = vmatpush1.msra.mxu0 %v96
    %258 = vmatprep.subr.mxu0 0.0
    %259 = vmatpush1.msra.mxu0 %v97
    %260 = vmatprep.subr.mxu0 0.0
    %261 = vmatpush1.msra.mxu0 %v98
    %262 = vmatprep.subr.mxu0 0.0
    %263 = vmatpush1.msra.mxu0 %v99
    %264 = vmatprep.subr.mxu0 0.0
    %265 = vmatpush1.msra.mxu0 %v100
    %266 = vmatprep.subr.mxu0 0.0
    %267 = vmatpush1.msra.mxu0 %v101
    %268 = vmatprep.subr.mxu0 0.0
    %269 = vmatpush1.msra.mxu0 %v102
    %270 = vmatprep.subr.mxu0 0.0
    %271 = vmatpush1.msra.mxu0 %v103
    %272 = vmatprep.subr.mxu0 0.0
    %273 = vmatpush1.msra.mxu0 %v104
    %274 = vmatprep.subr.mxu0 0.0
    %275 = vmatpush1.msra.mxu0 %v105
    %276 = vmatprep.subr.mxu0 0.0
    %277 = vmatpush1.msra.mxu0 %v106
    %278 = vmatprep.subr.mxu0 0.0
    %279 = vmatpush1.msra.mxu0 %v107
    %280 = vmatprep.subr.mxu0 0.0
    %281 = vmatpush1.msra.mxu0 %v108
    %282 = vmatprep.subr.mxu0 0.0
    %283 = vmatpush1.msra.mxu0 %v109
    %284 = vmatprep.subr.mxu0 0.0
    %285 = vmatpush1.msra.mxu0 %v110
    %286 = vmatprep.subr.mxu0 0.0
    %287 = vmatpush1.msra.mxu0 %v111
    %288 = vmatprep.subr.mxu0 0.0
    %289 = vmatpush1.msra.mxu0 %v112
    %290 = vmatprep.subr.mxu0 0.0
    %291 = vmatpush1.msra.mxu0 %v113
    %292 = vmatprep.mubr.f32.mxu0 %v41
    %293 = vmatmul.mubr.f32.gmra.mrb[0].mxu0 %v40
    %v294 = vpop.f32.mrb[0].mxu0
    %v295 = vadd.f32 %v220, %v294
    %v296 = vpop.f32.mrb[0].mxu0
    %297 = vmatprep.mubr.f32.mxu0 %v47
    %298 = vmatmul.mubr.f32.gmra.mrb[0].mxu0 %v46
    %v299 = vpop.f32.mrb[0].mxu0
    %v300 = vadd.f32 %v225, %v299
    %v301 = vpop.f32.mrb[0].mxu0
    %302 = vdwg.mxu0
    %303 = vmatprep.subr.mxu0 0.0
    %304 = vmatpush1.msra.mxu0 %v114
    %305 = vmatprep.subr.mxu0 0.0
    %306 = vmatpush1.msra.mxu0 %v115
    %307 = vmatprep.subr.mxu0 0.0
    %308 = vmatpush1.msra.mxu0 %v116
    %309 = vmatprep.subr.mxu0 0.0
    %310 = vmatpush1.msra.mxu0 %v117
    %311 = vmatprep.subr.mxu0 0.0
    %312 = vmatpush1.msra.mxu0 %v118
    %313 = vmatprep.subr.mxu0 0.0
    %314 = vmatpush1.msra.mxu0 %v119
    %315 = vmatprep.subr.mxu0 0.0
    %316 = vmatpush1.msra.mxu0 %v120
    %317 = vmatprep.subr.mxu0 0.0
    %318 = vmatpush1.msra.mxu0 %v121
    %319 = vmatprep.subr.mxu0 0.0
    %320 = vmatpush1.msra.mxu0 %v122
    %321 = vmatprep.subr.mxu0 0.0
    %322 = vmatpush1.msra.mxu0 %v123
    %323 = vmatprep.subr.mxu0 0.0
    %324 = vmatpush1.msra.mxu0 %v124
    %325 = vmatprep.subr.mxu0 0.0
    %326 = vmatpush1.msra.mxu0 %v125
    %327 = vmatprep.subr.mxu0 0.0
    %328 = vmatpush1.msra.mxu0 %v126
    %329 = vmatprep.subr.mxu0 0.0
    %330 = vmatpush1.msra.mxu0 %v127
    %331 = vmatprep.subr.mxu0 0.0
    %332 = vmatpush1.msra.mxu0 %v128
    %333 = vmatprep.subr.mxu0 0.0
    %334 = vmatpush1.msra.mxu0 %v129
    %335 = vmatprep.subr.mxu0 0.0
    %336 = vmatpush1.msra.mxu0 %v130
    %337 = vmatprep.subr.mxu0 0.0
    %338 = vmatpush1.msra.mxu0 %v131
    %339 = vmatprep.subr.mxu0 0.0
    %340 = vmatpush1.msra.mxu0 %v132
    %341 = vmatprep.subr.mxu0 0.0
    %342 = vmatpush1.msra.mxu0 %v133
    %343 = vmatprep.subr.mxu0 0.0
    %344 = vmatpush1.msra.mxu0 %v134
    %345 = vmatprep.subr.mxu0 0.0
    %346 = vmatpush1.msra.mxu0 %v135
    %347 = vmatprep.subr.mxu0 0.0
    %348 = vmatpush1.msra.mxu0 %v136
    %349 = vmatprep.subr.mxu0 0.0
    %350 = vmatpush1.msra.mxu0 %v137
    %351 = vmatprep.subr.mxu0 0.0
    %352 = vmatpush1.msra.mxu0 %v138
    %353 = vmatprep.subr.mxu0 0.0
    %354 = vmatpush1.msra.mxu0 %v139
    %355 = vmatprep.subr.mxu0 0.0
    %356 = vmatpush1.msra.mxu0 %v140
    %357 = vmatprep.subr.mxu0 0.0
    %358 = vmatpush1.msra.mxu0 %v141
    %359 = vmatprep.subr.mxu0 0.0
    %360 = vmatpush1.msra.mxu0 %v142
    %361 = vmatprep.subr.mxu0 0.0
    %362 = vmatpush1.msra.mxu0 %v143
    %363 = vmatprep.subr.mxu0 0.0
    %364 = vmatpush1.msra.mxu0 %v144
    %365 = vmatprep.subr.mxu0 0.0
    %366 = vmatpush1.msra.mxu0 %v145
    %367 = vmatprep.mubr.f32.mxu0 %v43
    %368 = vmatmul.mubr.f32.gmra.mrb[0].mxu0 %v42
    %v369 = vpop.f32.mrb[0].mxu0
    %v370 = vadd.f32 %v295, %v369
    %v371 = vpop.f32.mrb[0].mxu0
    %372 = vmatprep.mubr.f32.mxu0 %v49
    %373 = vmatmul.mubr.f32.gmra.mrb[0].mxu0 %v48
    %v374 = vpop.f32.mrb[0].mxu0
    %v375 = vadd.f32 %v300, %v374
    %v376 = vpop.f32.mrb[0].mxu0
    %377 = vdwg.mxu0
    %v378 = vmax.f32 %v370, 0.0
    %v379 = vmax.f32 %v375, 0.0
    %v380 = vld [vmem:[%s3] sm:$0xff]
    %v381 = vld [vmem:[%s3 + $0x8] sm:$0xff]
    %v382 = vld [vmem:[%s3 + $0x10] sm:$0xff]
    %v383 = vld [vmem:[%s3 + $0x18] sm:$0xff]
    %v384 = vld [vmem:[%s3 + $0x20] sm:$0xff]
    %v385 = vld [vmem:[%s3 + $0x28] sm:$0xff]
    %v386 = vld [vmem:[%s3 + $0x30] sm:$0xff]
    %v387 = vld [vmem:[%s3 + $0x38] sm:$0xff]
    %v388 = vld [vmem:[%s3 + $0x40] sm:$0xff]
    %v389 = vld [vmem:[%s3 + $0x48] sm:$0xff]
    %v390 = vld [vmem:[%s3 + $0x50] sm:$0xff]
    %v391 = vld [vmem:[%s3 + $0x58] sm:$0xff]
    %v392 = vld [vmem:[%s3 + $0x60] sm:$0xff]
    %v393 = vld [vmem:[%s3 + $0x68] sm:$0xff]
    %v394 = vld [vmem:[%s3 + $0x70] sm:$0xff]
    %v395 = vld [vmem:[%s3 + $0x78] sm:$0xff]
    %v396 = vld [vmem:[%s4] sm:$0x1]
    %v398 = vlaneseq
    %v399 = vshrl.u32 %v398, 7
    %v400 = vsub.s32 0, %v399
    %v401 = vrot.slane %v396, %v400
    %403 = vmatprep.subr.mxu0 0.0
    %404 = vmatpush1.msra.mxu0 %v380
    %405 = vmatprep.subr.mxu0 0.0
    %406 = vmatpush1.msra.mxu0 %v381
    %407 = vmatprep.subr.mxu0 0.0
    %408 = vmatpush1.msra.mxu0 %v382
    %409 = vmatprep.subr.mxu0 0.0
    %410 = vmatpush1.msra.mxu0 %v383
    %411 = vmatprep.subr.mxu0 0.0
    %412 = vmatpush1.msra.mxu0 %v384
    %413 = vmatprep.subr.mxu0 0.0
    %414 = vmatpush1.msra.mxu0 %v385
    %415 = vmatprep.subr.mxu0 0.0
    %416 = vmatpush1.msra.mxu0 %v386
    %417 = vmatprep.subr.mxu0 0.0
    %418 = vmatpush1.msra.mxu0 %v387
    %419 = vmatprep.subr.mxu0 0.0
    %420 = vmatpush1.msra.mxu0 %v388
    %421 = vmatprep.subr.mxu0 0.0
    %422 = vmatpush1.msra.mxu0 %v389
    %423 = vmatprep.subr.mxu0 0.0
    %424 = vmatpush1.msra.mxu0 %v390
    %425 = vmatprep.subr.mxu0 0.0
    %426 = vmatpush1.msra.mxu0 %v391
    %427 = vmatprep.subr.mxu0 0.0
    %428 = vmatpush1.msra.mxu0 %v392
    %429 = vmatprep.subr.mxu0 0.0
    %430 = vmatpush1.msra.mxu0 %v393
    %431 = vmatprep.subr.mxu0 0.0
    %432 = vmatpush1.msra.mxu0 %v394
    %433 = vmatprep.subr.mxu0 0.0
    %434 = vmatpush1.msra.mxu0 %v395
    %435 = vmatprep.subr.mxu0 0.0
    %436 = vmatpush1.msra.mxu0 0.0
    %437 = vmatprep.subr.mxu0 0.0
    %438 = vmatpush1.msra.mxu0 0.0
    %439 = vmatprep.subr.mxu0 0.0
    %440 = vmatpush1.msra.mxu0 0.0
    %441 = vmatprep.subr.mxu0 0.0
    %442 = vmatpush1.msra.mxu0 0.0
    %443 = vmatprep.subr.mxu0 0.0
    %444 = vmatpush1.msra.mxu0 0.0
    %445 = vmatprep.subr.mxu0 0.0
    %446 = vmatpush1.msra.mxu0 0.0
    %447 = vmatprep.subr.mxu0 0.0
    %448 = vmatpush1.msra.mxu0 0.0
    %449 = vmatprep.subr.mxu0 0.0
    %450 = vmatpush1.msra.mxu0 0.0
    %451 = vmatprep.subr.mxu0 0.0
    %452 = vmatpush1.msra.mxu0 0.0
    %453 = vmatprep.subr.mxu0 0.0
    %454 = vmatpush1.msra.mxu0 0.0
    %455 = vmatprep.subr.mxu0 0.0
    %456 = vmatpush1.msra.mxu0 0.0
    %457 = vmatprep.subr.mxu0 0.0
    %458 = vmatpush1.msra.mxu0 0.0
    %459 = vmatprep.subr.mxu0 0.0
    %460 = vmatpush1.msra.mxu0 0.0
    %461 = vmatprep.subr.mxu0 0.0
    %462 = vmatpush1.msra.mxu0 0.0
    %463 = vmatprep.subr.mxu0 0.0
    %464 = vmatpush1.msra.mxu0 0.0
    %465 = vmatprep.subr.mxu0 0.0
    %466 = vmatpush1.msra.mxu0 0.0
    %467 = vmatprep.mubr.f32.mxu0 0.0
    %468 = vmatmul.mubr.f32.gmra.mrb[0].mxu0 %v378
    %v469 = vpop.f32.mrb[0].mxu0
    %v470 = vadd.f32 %v401, %v469
    %v471 = vpop.f32.mrb[0].mxu0
    %472 = vmatprep.mubr.f32.mxu0 0.0
    %473 = vmatmul.mubr.f32.gmra.mrb[0].mxu0 %v379
    %v474 = vpop.f32.mrb[0].mxu0
    %v475 = vadd.f32 %v401, %v474
    %v476 = vpop.f32.mrb[0].mxu0
    %477 = vdwg.mxu0
    %478 = vxpose.xlu0.b32.start [1/16] %v470, 128
    %479 = vxpose.xlu0.b32.cont [2/16] %v475, 128
    %480 = vxpose.xlu0.b32.cont [3/16] 0.0, 128
    %481 = vxpose.xlu0.b32.cont [4/16] 0.0, 128
    %482 = vxpose.xlu0.b32.cont [5/16] 0.0, 128
    %483 = vxpose.xlu0.b32.cont [6/16] 0.0, 128
    %484 = vxpose.xlu0.b32.cont [7/16] 0.0, 128
    %485 = vxpose.xlu0.b32.cont [8/16] 0.0, 128
    %486 = vxpose.xlu0.b32.cont [9/16] 0.0, 128
    %487 = vxpose.xlu0.b32.cont [10/16] 0.0, 128
    %488 = vxpose.xlu0.b32.cont [11/16] 0.0, 128
    %489 = vxpose.xlu0.b32.cont [12/16] 0.0, 128
    %490 = vxpose.xlu0.b32.cont [13/16] 0.0, 128
    %491 = vxpose.xlu0.b32.cont [14/16] 0.0, 128
    %492 = vxpose.xlu0.b32.cont [15/16] 0.0, 128
    %493 = vxpose.xlu0.b32.end [16/16] 0.0, 128
    %v494 = vpop.trf.xlu0
    %v495 = vpop.trf.xlu0
    %v496 = vpop.trf.xlu0
    %v497 = vpop.trf.xlu0
    %v498 = vpop.trf.xlu0
    %v499 = vpop.trf.xlu0
    %v500 = vpop.trf.xlu0
    %v501 = vpop.trf.xlu0
    %v502 = vpop.trf.xlu0
    %v503 = vpop.trf.xlu0
    %v504 = vpop.trf.xlu0
    %v505 = vpop.trf.xlu0
    %v506 = vpop.trf.xlu0
    %v507 = vpop.trf.xlu0
    %v508 = vpop.trf.xlu0
    %v509 = vpop.trf.xlu0
    %vm510 = vcmask 122880
    %511 = vst.msk [vmem:[#allocation5] sm:$0x1] %vm510, %v494
    %514 = vrot.lane.b32.xlu0 %v470, 127
    %v515 = vpop.permute.xlu0 %514
    %516 = vrot.lane.b32.xlu0 %v475, 127
    %v517 = vpop.permute.xlu0 %516
    %520 = vxpose.xlu0.b32.start [1/16] %v515, 128
    %521 = vxpose.xlu0.b32.cont [2/16] %v517, 128
    %522 = vxpose.xlu0.b32.cont [3/16] 0.0, 128
    %523 = vxpose.xlu0.b32.cont [4/16] 0.0, 128
    %524 = vxpose.xlu0.b32.cont [5/16] 0.0, 128
    %525 = vxpose.xlu0.b32.cont [6/16] 0.0, 128
    %526 = vxpose.xlu0.b32.cont [7/16] 0.0, 128
    %527 = vxpose.xlu0.b32.cont [8/16] 0.0, 128
    %528 = vxpose.xlu0.b32.cont [9/16] 0.0, 128
    %529 = vxpose.xlu0.b32.cont [10/16] 0.0, 128
    %530 = vxpose.xlu0.b32.cont [11/16] 0.0, 128
    %531 = vxpose.xlu0.b32.cont [12/16] 0.0, 128
    %532 = vxpose.xlu0.b32.cont [13/16] 0.0, 128
    %533 = vxpose.xlu0.b32.cont [14/16] 0.0, 128
    %534 = vxpose.xlu0.b32.cont [15/16] 0.0, 128
    %535 = vxpose.xlu0.b32.end [16/16] 0.0, 128
    %v536 = vpop.trf.xlu0
    %v537 = vpop.trf.xlu0
    %v538 = vpop.trf.xlu0
    %v539 = vpop.trf.xlu0
    %v540 = vpop.trf.xlu0
    %v541 = vpop.trf.xlu0
    %v542 = vpop.trf.xlu0
    %v543 = vpop.trf.xlu0
    %v544 = vpop.trf.xlu0
    %v545 = vpop.trf.xlu0
    %v546 = vpop.trf.xlu0
    %v547 = vpop.trf.xlu0
    %v548 = vpop.trf.xlu0
    %v549 = vpop.trf.xlu0
    %v550 = vpop.trf.xlu0
    %v551 = vpop.trf.xlu0
    %552 = vst.msk [vmem:[#allocation6] sm:$0x1] %vm510, %v536
    // Predicated region
    $region26: #{tpu_custom_call.1} parent=1 // pred_check
      _
    $region27: #{tpu_custom_call.1} parent=1 // pred_check_branch
      %554 = sbr.rel (0) target = $region29
    $region28: #{tpu_custom_call.1} parent=1 // pred_region
      %s556 = ssub.s32 16, 16
      %557 = vsyncadd [#allocation4], %s556
      %s559 = sshll.u32 [#allocation5], 4
      %s560 = int_to_ptr.vmem [resolvable:$true] %s559
      %562 = dma.vmem_to_hbm [thread:$0]  %s560, 16, %s5, [#allocation4]
    $region29: #{tpu_custom_call.1} parent=1 // pred_fallthru
      _
    // Predicated region
    $region30: #{tpu_custom_call.1} parent=1 // pred_check
      _
    $region31: #{tpu_custom_call.1} parent=1 // pred_check_branch
      %564 = sbr.rel (0) target = $region33
    $region32: #{tpu_custom_call.1} parent=1 // pred_region
      %s566 = ssub.s32 16, 16
      %567 = vsyncadd [#allocation7], %s566
      %s569 = sshll.u32 [#allocation6], 4
      %s570 = int_to_ptr.vmem [resolvable:$true] %s569
      %572 = dma.vmem_to_hbm [thread:$0]  %s570, 16, %s6, [#allocation7]
    $region33: #{tpu_custom_call.1} parent=1 // pred_fallthru
      _
    // Predicated region
    $region34: #{tpu_custom_call.1} parent=1 // pred_check
      _
    $region35: #{tpu_custom_call.1} parent=1 // pred_check_branch
      %574 = sbr.rel (0) target = $region37
    $region36: #{tpu_custom_call.1} parent=1 // pred_region
      %575 = dma.done [#allocation4], 16
    $region37: #{tpu_custom_call.1} parent=1 // pred_fallthru
      _
    // Predicated region
    $region38: #{tpu_custom_call.1} parent=1 // pred_check
      _
    $region39: #{tpu_custom_call.1} parent=1 // pred_check_branch
      %577 = sbr.rel (0) target = $region41
    $region40: #{tpu_custom_call.1} parent=1 // pred_region
      %578 = dma.done [#allocation7], 16
    $region41: #{tpu_custom_call.1} parent=1 // pred_fallthru
      _
    %579 = vsyncpa [#allocation3], 1
    %580 = vsyncpa [#allocation4], 1
    %581 = vsyncpa [#allocation7], 1

</llo_original>
